<compile_context>
chip_gen: v7x
topology: tpu7x:2x2x1
jax: 0.10.0
libtpu: 0.0.40
codegen_flags: <defaults>
</compile_context>

<pallas_src>
import jax
import jax.numpy as jnp
import numpy as np
from jax import lax
from jax.experimental import pallas as pl
from jax.experimental.pallas import tpu as pltpu


# ----------------------------- Pallas kernel ------------------------------- #
def _make_cbow_kernel(C, NEG1, resident):
    """C = 2*window context slots, NEG1 = 1 positive + `negative` negatives."""

    def kernel(ctx_sm, wn_sm,              # SMEM (scalar prefetch): flat int32 indices
               invl_ref, wgt_ref,          # VMEM tiles: [TB,1] 1/len, [TB,NEG1] weights
               emb0_ref, emb1_ref,         # tables: VMEM (resident) or HBM (pl.ANY)
               out_ref,                    # VMEM out tile: [1,1,128] (loss in lane 0)
               buf, *dma_sem):             # scratch: [TB, C+NEG1, Dp] (+ DMA sem)
        TB = buf.shape[0]
        base = pl.program_id(0) * TB

        def gather_row(r):
            cb = (base + r) * C
            wb = (base + r) * NEG1
            if resident:
                # direct dynamic-row vector loads from the VMEM-resident tables
                for j in range(C):
                    buf[r, pl.ds(j, 1), :] = emb0_ref[pl.ds(ctx_sm[cb + j], 1), :]
                for k in range(NEG1):
                    buf[r, pl.ds(C + k, 1), :] = emb1_ref[pl.ds(wn_sm[wb + k], 1), :]
            else:
                # per-row HBM DMA gather; all copies signal the SAME semaphore
                sem = dma_sem[0].at[0]
                for j in range(C):
                    pltpu.make_async_copy(
                        emb0_ref.at[pl.ds(ctx_sm[cb + j], 1), :],
                        buf.at[r, pl.ds(j, 1), :], sem).start()
                for k in range(NEG1):
                    pltpu.make_async_copy(
                        emb1_ref.at[pl.ds(wn_sm[wb + k], 1), :],
                        buf.at[r, pl.ds(C + k, 1), :], sem).start()

        # gather every row of this batch tile; manual x2 unroll (TB % 8 == 0)
        @pl.loop(0, TB // 2)
        def _(s):
            gather_row(2 * s)
            gather_row(2 * s + 1)

        if not resident:
            # ONE aggregated wait: DMA semaphores count bytes and the whole
            # scratch buffer's byte count equals the total issued above.
            pltpu.make_async_copy(buf, buf, dma_sem[0].at[0]).wait()

        # CBOWMean: sum of context rows * (1/len)  (emb0 pad row is zero)
        c_mean = jnp.sum(buf[:, pl.ds(0, C), :], axis=1) * invl_ref[...]   # [TB, Dp]
        wn = buf[:, pl.ds(C, NEG1), :]                                     # [TB, NEG1, Dp]

        # positive (col 0) + negative inner products: one batched multiply-reduce
        ips = jnp.sum(wn * c_mean[:, None, :], axis=2)                     # [TB, NEG1]
        col = lax.broadcasted_iota(jnp.int32, ips.shape, 1)
        x = jnp.clip(jnp.where(col == 0, ips, -ips), -10.0, 10.0)
        # -logsigmoid(x) = log1p(exp(-x)); weights = [1 | neg_mask] (0 on padding)
        tile_loss = jnp.sum(jnp.log1p(jnp.exp(-x)) * wgt_ref[...])

        # lane-dense (1,1,128) output: tile loss in lane 0, zeros elsewhere
        lane = lax.broadcasted_iota(jnp.int32, out_ref.shape, 2)
        out_ref[...] = jnp.where(lane == 0, tile_loss, 0.0)

    return kernel


# ------------------------------ wrapper ------------------------------------ #
def cbow_forward(data, emb0, emb1, *, window, negative, block_b=128):
    """Forward pass of CBOW; returns the scalar loss (matches the PyTorch module)."""
    w2 = 2 * window
    neg1 = negative + 1
    B = data.shape[0]
    V1, D = emb0.shape                       # V1 = vocab_size + 1 (padding row)
    V = emb1.shape[0]

    ctx_idx = data[:, :w2].astype(jnp.int32)                          # [B, 2W]
    inv_lens = (1.0 / data[:, w2].astype(jnp.float32))[:, None]       # [B, 1]
    word_idx = data[:, w2 + 1:w2 + 2].astype(jnp.int32)               # [B, 1]
    neg_idx = data[:, w2 + 2:w2 + 2 + negative].astype(jnp.int32)     # [B, NEG]
    neg_mask = data[:, w2 + 2 + negative:].astype(jnp.float32)        # [B, NEG]

    # fuse positive + negatives into one [B, NEG+1] index / weight matrix
    widneg = jnp.concatenate([word_idx, neg_idx], axis=1)
    weights = jnp.concatenate([jnp.ones((B, 1), jnp.float32), neg_mask], axis=1)

    # batch tile: as large as useful (amortize ~0.35us/step), multiple of 8
    block_b = min(block_b, pl.cdiv(B, 8) * 8)
    block_b = max(8, (block_b // 8) * 8)
    Bp = pl.cdiv(B, block_b) * block_b
    pad = Bp - B
    if pad:
        ctx_idx = jnp.concatenate([ctx_idx, jnp.full((pad, w2), V1 - 1, jnp.int32)], 0)
        widneg = jnp.concatenate([widneg, jnp.zeros((pad, neg1), jnp.int32)], 0)
        inv_lens = jnp.concatenate([inv_lens, jnp.ones((pad, 1), jnp.float32)], 0)
        weights = jnp.concatenate([weights, jnp.zeros((pad, neg1), jnp.float32)], 0)

    # FLAT 1-D index arrays for SMEM (2-D SMEM pads the last dim to 128 words)
    ctx_flat = ctx_idx.reshape(-1)                                    # [Bp*2W]
    wn_flat = widneg.reshape(-1)                                      # [Bp*(NEG+1)]

    # lane-pad the embedding dim, sublane-pad the vocab rows (layout plumbing)
    Dp = pl.cdiv(D, 128) * 128
    V1p = pl.cdiv(V1, 8) * 8
    Vp = pl.cdiv(V, 8) * 8
    emb0p = jnp.pad(emb0, ((0, V1p - V1), (0, Dp - D)))               # [V1p, Dp]
    emb1p = jnp.pad(emb1, ((0, Vp - V), (0, Dp - D)))                 # [Vp,  Dp]

    # resident-table decision: tables + scratch must fit comfortably in VMEM
    # (v5e/v6e: 128 MiB physical, v7x: 64 MiB).  Otherwise HBM row-gather.
    try:
        vmem_cap = int(pltpu.get_tpu_info().vmem_capacity_bytes)
    except Exception:
        vmem_cap = 64 * 1024 * 1024                                   # v7x floor
    table_bytes = (V1p + Vp) * Dp * 4
    buf_bytes = block_b * (pl.cdiv(w2 + neg1, 8) * 8) * Dp * 4
    need = 2 * table_bytes + 2 * buf_bytes + (4 << 20)
    resident = need <= (3 * vmem_cap) // 4
    vmem_limit = int(min(need, vmem_cap)) if (resident and need > (16 << 20)) else None
    # TODO(synk): on v7x, store the tables in bf16 (upcast in-kernel) so bigger
    # vocabularies stay resident under the 64 MiB budget.

    nb = Bp // block_b
    if resident:
        emb_specs = [pl.BlockSpec((V1p, Dp), lambda i, c, w: (0, 0)),
                     pl.BlockSpec((Vp, Dp), lambda i, c, w: (0, 0))]
        scratch = [pltpu.VMEM((block_b, w2 + neg1, Dp), jnp.float32)]
    else:
        emb_specs = [pl.BlockSpec(memory_space=pl.ANY),
                     pl.BlockSpec(memory_space=pl.ANY)]
        scratch = [pltpu.VMEM((block_b, w2 + neg1, Dp), jnp.float32),
                   pltpu.SemaphoreType.DMA((1,))]

    grid_spec = pltpu.PrefetchScalarGridSpec(
        num_scalar_prefetch=2,                                        # ctx_flat, wn_flat
        grid=(nb,),
        in_specs=[pl.BlockSpec((block_b, 1), lambda i, c, w: (i, 0)),      # 1/len tile
                  pl.BlockSpec((block_b, neg1), lambda i, c, w: (i, 0))]   # weights tile
                 + emb_specs,
        out_specs=pl.BlockSpec((1, 1, 128), lambda i, c, w: (i, 0, 0)),
        scratch_shapes=scratch,
    )
    partials = pl.pallas_call(
        _make_cbow_kernel(w2, neg1, resident),
        out_shape=jax.ShapeDtypeStruct((nb, 1, 128), jnp.float32),
        grid_spec=grid_spec,
        compiler_params=pltpu.CompilerParams(
            dimension_semantics=("parallel",),                        # megacore on v7x
            vmem_limit_bytes=vmem_limit),
    )(ctx_flat, wn_flat, inv_lens, weights, emb0p, emb1p)
    return jnp.sum(partials)                                          # tiny host-side reduce


# --------------------------- pure-JAX reference ----------------------------- #
def cbow_ref(data, emb0, emb1, *, window, negative):
    w2 = 2 * window
    ctx = data[:, :w2]
    lens = data[:, w2].astype(jnp.float32)
    wid = data[:, w2 + 1]
    neg = data[:, w2 + 2:w2 + 2 + negative]
    nmask = data[:, w2 + 2 + negative:].astype(jnp.float32)

    c = emb0[ctx]                                   # [B, 2W, D]
    w = emb1[wid]                                   # [B, D]
    n = emb1[neg]                                   # [B, NEG, D]
    cm = jnp.sum(c, axis=1) / lens[:, None]         # CBOWMean
    pos = jnp.sum(cm * w, axis=1)
    negip = jnp.einsum('bkd,bd->bk', n, cm)
    logsig = lambda x: -jnp.log1p(jnp.exp(-x))
    return (jnp.sum(-logsig(jnp.clip(pos, -10.0, 10.0)))
            + jnp.sum(-logsig(jnp.clip(-negip, -10.0, 10.0)) * nmask))


# -------------------------------- main -------------------------------------- #
if __name__ == "__main__":
    # small, deterministic config (mirrors args.vocab_size / size / window / negative)
    VOCAB, DIM, WINDOW, NEGATIVE, BATCH = 50, 32, 3, 5, 16
    W2 = 2 * WINDOW
    PAD = VOCAB

    key = jax.random.PRNGKey(0)
    k_e0, k_e1, k_ctx, k_len, k_wid, k_neg, k_msk = jax.random.split(key, 7)

    # embedding init exactly as in __init__: U(-0.5/size, 0.5/size), pad row zeroed
    emb0 = jax.random.uniform(k_e0, (VOCAB + 1, DIM), jnp.float32,
                              -0.5 / DIM, 0.5 / DIM)
    emb0 = emb0.at[VOCAB].set(0.0)
    emb1 = jax.random.uniform(k_e1, (VOCAB, DIM), jnp.float32,
                              -0.5 / DIM, 0.5 / DIM)

    # build the int32 `data` matrix: [ctx(2W) | len(1) | word(1) | neg(NEG) | mask(NEG)]
    ctx_full = jax.random.randint(k_ctx, (BATCH, W2), 0, VOCAB)
    lens = jax.random.randint(k_len, (BATCH,), 1, W2 + 1)
    pos = jnp.arange(W2)[None, :]
    ctx = jnp.where(pos < lens[:, None], ctx_full, PAD)          # pad tail with pad_idx
    word_idx = jax.random.randint(k_wid, (BATCH,), 0, VOCAB)
    neg_idx = jax.random.randint(k_neg, (BATCH, NEGATIVE), 0, VOCAB)
    neg_mask = (jax.random.uniform(k_msk, (BATCH, NEGATIVE)) > 0.25).astype(jnp.int32)

    data = jnp.concatenate(
        [ctx, lens[:, None], word_idx[:, None], neg_idx, neg_mask],
        axis=1).astype(jnp.int32)                                # [B, 2W+2+2*NEG]

    loss = cbow_forward(data, emb0, emb1, window=WINDOW, negative=NEGATIVE)
    loss = jax.block_until_ready(loss)

    ref = cbow_ref(data, emb0, emb1, window=WINDOW, negative=NEGATIVE)
    np.testing.assert_allclose(np.asarray(loss), np.asarray(ref),
                               rtol=1e-4, atol=1e-4)

    print("KERNEL_OK")
</pallas_src>

<mosaic_0001>
module attributes {stable_mosaic.version = 11 : i64} {
  func.func @kernel(%arg0: i32, %arg1: memref<96xi32, #tpu.memory_space<smem>>, %arg2: memref<96xi32, #tpu.memory_space<smem>>, %arg3: memref<16x1xf32, #tpu.memory_space<vmem>>, %arg4: memref<16x6xf32, #tpu.memory_space<vmem>>, %arg5: memref<56x128xf32, #tpu.memory_space<vmem>>, %arg6: memref<56x128xf32, #tpu.memory_space<vmem>>, %arg7: memref<1x1x128xf32, #tpu.memory_space<vmem>>, %arg8: memref<16x12x128xf32, #tpu.memory_space<vmem>>) attributes {dimension_semantics = [#tpu.dimension_semantics<parallel>], iteration_bounds = array<i64: 1>, scalar_prefetch = 2 : i64, scratch_operands = 1 : i64, tpu.core_type = #tpu.core_type<tc>, window_params = [{transform_indices = @transform_0, window_bounds = array<i64: 16, 1>}, {transform_indices = @transform_1, window_bounds = array<i64: 16, 6>}, {pipeline_mode = #tpu.pipeline_mode<synchronous>, transform_indices = @transform_2, window_bounds = array<i64: 56, 128>}, {pipeline_mode = #tpu.pipeline_mode<synchronous>, transform_indices = @transform_3, window_bounds = array<i64: 56, 128>}, {transform_indices = @transform_4, window_bounds = array<i64: 1, 1, 128>}]} {
    %c16_i32 = arith.constant 16 : i32
    %0 = arith.muli %arg0, %c16_i32 : i32
    %c0_i32 = arith.constant 0 : i32
    %c8_i32 = arith.constant 8 : i32
    %1 = arith.addi %c0_i32, %c8_i32 : i32
    %c1_i32 = arith.constant 1 : i32
    scf.for %arg9 = %c0_i32 to %1 step %c1_i32  : i32 {
      %c1_i32_21 = arith.constant 1 : i32
      %39 = arith.muli %arg9, %c1_i32_21 : i32
      %c0_i32_22 = arith.constant 0 : i32
      %40 = arith.addi %c0_i32_22, %39 : i32
      %c2_i32 = arith.constant 2 : i32
      %41 = arith.muli %c2_i32, %40 : i32
      %42 = arith.addi %0, %41 : i32
      %c6_i32 = arith.constant 6 : i32
      %43 = arith.muli %42, %c6_i32 : i32
      %44 = arith.addi %0, %41 : i32
      %c6_i32_23 = arith.constant 6 : i32
      %45 = arith.muli %44, %c6_i32_23 : i32
      %c0_i32_24 = arith.constant 0 : i32
      %46 = arith.addi %43, %c0_i32_24 : i32
      %47 = arith.index_cast %46 : i32 to index
      %48 = memref.load %arg1[%47] : memref<96xi32, #tpu.memory_space<smem>>
      %49 = arith.index_cast %48 : i32 to index
      %c0_25 = arith.constant 0 : index
      %50 = vector.load %arg5[%49, %c0_25] : memref<56x128xf32, #tpu.memory_space<vmem>>, vector<1x128xf32>
      %51 = arith.index_cast %41 : i32 to index
      %c0_26 = arith.constant 0 : index
      %c0_27 = arith.constant 0 : index
      %52 = vector.load %arg8[%51, %c0_26, %c0_27] : memref<16x12x128xf32, #tpu.memory_space<vmem>>, vector<1x1x128xf32>
      %53 = vector.shape_cast %52 : vector<1x1x128xf32> to vector<1x128xf32>
      %54 = vector.shape_cast %50 : vector<1x128xf32> to vector<1x1x128xf32>
      tpu.vector_store %arg8[%51, %c0_26, %c0_27], %54 {strides = array<i32>} : memref<16x12x128xf32, #tpu.memory_space<vmem>>, vector<1x1x128xf32>,
      %c1_i32_28 = arith.constant 1 : i32
      %55 = arith.addi %43, %c1_i32_28 : i32
      %56 = arith.index_cast %55 : i32 to index
      %57 = memref.load %arg1[%56] : memref<96xi32, #tpu.memory_space<smem>>
      %58 = arith.index_cast %57 : i32 to index
      %c0_29 = arith.constant 0 : index
      %59 = vector.load %arg5[%58, %c0_29] : memref<56x128xf32, #tpu.memory_space<vmem>>, vector<1x128xf32>
      %60 = arith.index_cast %41 : i32 to index
      %c1 = arith.constant 1 : index
      %c0_30 = arith.constant 0 : index
      %61 = vector.load %arg8[%60, %c1, %c0_30] : memref<16x12x128xf32, #tpu.memory_space<vmem>>, vector<1x1x128xf32>
      %62 = vector.shape_cast %61 : vector<1x1x128xf32> to vector<1x128xf32>
      %63 = vector.shape_cast %59 : vector<1x128xf32> to vector<1x1x128xf32>
      tpu.vector_store %arg8[%60, %c1, %c0_30], %63 {strides = array<i32>} : memref<16x12x128xf32, #tpu.memory_space<vmem>>, vector<1x1x128xf32>,
      %c2_i32_31 = arith.constant 2 : i32
      %64 = arith.addi %43, %c2_i32_31 : i32
      %65 = arith.index_cast %64 : i32 to index
      %66 = memref.load %arg1[%65] : memref<96xi32, #tpu.memory_space<smem>>
      %67 = arith.index_cast %66 : i32 to index
      %c0_32 = arith.constant 0 : index
      %68 = vector.load %arg5[%67, %c0_32] : memref<56x128xf32, #tpu.memory_space<vmem>>, vector<1x128xf32>
      %69 = arith.index_cast %41 : i32 to index
      %c2 = arith.constant 2 : index
      %c0_33 = arith.constant 0 : index
      %70 = vector.load %arg8[%69, %c2, %c0_33] : memref<16x12x128xf32, #tpu.memory_space<vmem>>, vector<1x1x128xf32>
      %71 = vector.shape_cast %70 : vector<1x1x128xf32> to vector<1x128xf32>
      %72 = vector.shape_cast %68 : vector<1x128xf32> to vector<1x1x128xf32>
      tpu.vector_store %arg8[%69, %c2, %c0_33], %72 {strides = array<i32>} : memref<16x12x128xf32, #tpu.memory_space<vmem>>, vector<1x1x128xf32>,
      %c3_i32 = arith.constant 3 : i32
      %73 = arith.addi %43, %c3_i32 : i32
      %74 = arith.index_cast %73 : i32 to index
      %75 = memref.load %arg1[%74] : memref<96xi32, #tpu.memory_space<smem>>
      %76 = arith.index_cast %75 : i32 to index
      %c0_34 = arith.constant 0 : index
      %77 = vector.load %arg5[%76, %c0_34] : memref<56x128xf32, #tpu.memory_space<vmem>>, vector<1x128xf32>
      %78 = arith.index_cast %41 : i32 to index
      %c3 = arith.constant 3 : index
      %c0_35 = arith.constant 0 : index
      %79 = vector.load %arg8[%78, %c3, %c0_35] : memref<16x12x128xf32, #tpu.memory_space<vmem>>, vector<1x1x128xf32>
      %80 = vector.shape_cast %79 : vector<1x1x128xf32> to vector<1x128xf32>
      %81 = vector.shape_cast %77 : vector<1x128xf32> to vector<1x1x128xf32>
      tpu.vector_store %arg8[%78, %c3, %c0_35], %81 {strides = array<i32>} : memref<16x12x128xf32, #tpu.memory_space<vmem>>, vector<1x1x128xf32>,
      %c4_i32 = arith.constant 4 : i32
      %82 = arith.addi %43, %c4_i32 : i32
      %83 = arith.index_cast %82 : i32 to index
      %84 = memref.load %arg1[%83] : memref<96xi32, #tpu.memory_space<smem>>
      %85 = arith.index_cast %84 : i32 to index
      %c0_36 = arith.constant 0 : index
      %86 = vector.load %arg5[%85, %c0_36] : memref<56x128xf32, #tpu.memory_space<vmem>>, vector<1x128xf32>
      %87 = arith.index_cast %41 : i32 to index
      %c4 = arith.constant 4 : index
      %c0_37 = arith.constant 0 : index
      %88 = vector.load %arg8[%87, %c4, %c0_37] : memref<16x12x128xf32, #tpu.memory_space<vmem>>, vector<1x1x128xf32>
      %89 = vector.shape_cast %88 : vector<1x1x128xf32> to vector<1x128xf32>
      %90 = vector.shape_cast %86 : vector<1x128xf32> to vector<1x1x128xf32>
      tpu.vector_store %arg8[%87, %c4, %c0_37], %90 {strides = array<i32>} : memref<16x12x128xf32, #tpu.memory_space<vmem>>, vector<1x1x128xf32>,
      %c5_i32 = arith.constant 5 : i32
      %91 = arith.addi %43, %c5_i32 : i32
      %92 = arith.index_cast %91 : i32 to index
      %93 = memref.load %arg1[%92] : memref<96xi32, #tpu.memory_space<smem>>
      %94 = arith.index_cast %93 : i32 to index
      %c0_38 = arith.constant 0 : index
      %95 = vector.load %arg5[%94, %c0_38] : memref<56x128xf32, #tpu.memory_space<vmem>>, vector<1x128xf32>
      %96 = arith.index_cast %41 : i32 to index
      %c5 = arith.constant 5 : index
      %c0_39 = arith.constant 0 : index
      %97 = vector.load %arg8[%96, %c5, %c0_39] : memref<16x12x128xf32, #tpu.memory_space<vmem>>, vector<1x1x128xf32>
      %98 = vector.shape_cast %97 : vector<1x1x128xf32> to vector<1x128xf32>
      %99 = vector.shape_cast %95 : vector<1x128xf32> to vector<1x1x128xf32>
      tpu.vector_store %arg8[%96, %c5, %c0_39], %99 {strides = array<i32>} : memref<16x12x128xf32, #tpu.memory_space<vmem>>, vector<1x1x128xf32>,
      %c0_i32_40 = arith.constant 0 : i32
      %100 = arith.addi %45, %c0_i32_40 : i32
      %101 = arith.index_cast %100 : i32 to index
      %102 = memref.load %arg2[%101] : memref<96xi32, #tpu.memory_space<smem>>
      %103 = arith.index_cast %102 : i32 to index
      %c0_41 = arith.constant 0 : index
      %104 = vector.load %arg6[%103, %c0_41] : memref<56x128xf32, #tpu.memory_space<vmem>>, vector<1x128xf32>
      %105 = arith.index_cast %41 : i32 to index
      %c6_42 = arith.constant 6 : index
      %c0_43 = arith.constant 0 : index
      %106 = vector.load %arg8[%105, %c6_42, %c0_43] : memref<16x12x128xf32, #tpu.memory_space<vmem>>, vector<1x1x128xf32>
      %107 = vector.shape_cast %106 : vector<1x1x128xf32> to vector<1x128xf32>
      %108 = vector.shape_cast %104 : vector<1x128xf32> to vector<1x1x128xf32>
      tpu.vector_store %arg8[%105, %c6_42, %c0_43], %108 {strides = array<i32>} : memref<16x12x128xf32, #tpu.memory_space<vmem>>, vector<1x1x128xf32>,
      %c1_i32_44 = arith.constant 1 : i32
      %109 = arith.addi %45, %c1_i32_44 : i32
      %110 = arith.index_cast %109 : i32 to index
      %111 = memref.load %arg2[%110] : memref<96xi32, #tpu.memory_space<smem>>
      %112 = arith.index_cast %111 : i32 to index
      %c0_45 = arith.constant 0 : index
      %113 = vector.load %arg6[%112, %c0_45] : memref<56x128xf32, #tpu.memory_space<vmem>>, vector<1x128xf32>
      %114 = arith.index_cast %41 : i32 to index
      %c7 = arith.constant 7 : index
      %c0_46 = arith.constant 0 : index
      %115 = vector.load %arg8[%114, %c7, %c0_46] : memref<16x12x128xf32, #tpu.memory_space<vmem>>, vector<1x1x128xf32>
      %116 = vector.shape_cast %115 : vector<1x1x128xf32> to vector<1x128xf32>
      %117 = vector.shape_cast %113 : vector<1x128xf32> to vector<1x1x128xf32>
      tpu.vector_store %arg8[%114, %c7, %c0_46], %117 {strides = array<i32>} : memref<16x12x128xf32, #tpu.memory_space<vmem>>, vector<1x1x128xf32>,
      %c2_i32_47 = arith.constant 2 : i32
      %118 = arith.addi %45, %c2_i32_47 : i32
      %119 = arith.index_cast %118 : i32 to index
      %120 = memref.load %arg2[%119] : memref<96xi32, #tpu.memory_space<smem>>
      %121 = arith.index_cast %120 : i32 to index
      %c0_48 = arith.constant 0 : index
      %122 = vector.load %arg6[%121, %c0_48] : memref<56x128xf32, #tpu.memory_space<vmem>>, vector<1x128xf32>
      %123 = arith.index_cast %41 : i32 to index
      %c8 = arith.constant 8 : index
      %c0_49 = arith.constant 0 : index
      %124 = vector.load %arg8[%123, %c8, %c0_49] : memref<16x12x128xf32, #tpu.memory_space<vmem>>, vector<1x1x128xf32>
      %125 = vector.shape_cast %124 : vector<1x1x128xf32> to vector<1x128xf32>
      %126 = vector.shape_cast %122 : vector<1x128xf32> to vector<1x1x128xf32>
      tpu.vector_store %arg8[%123, %c8, %c0_49], %126 {strides = array<i32>} : memref<16x12x128xf32, #tpu.memory_space<vmem>>, vector<1x1x128xf32>,
      %c3_i32_50 = arith.constant 3 : i32
      %127 = arith.addi %45, %c3_i32_50 : i32
      %128 = arith.index_cast %127 : i32 to index
      %129 = memref.load %arg2[%128] : memref<96xi32, #tpu.memory_space<smem>>
      %130 = arith.index_cast %129 : i32 to index
      %c0_51 = arith.constant 0 : index
      %131 = vector.load %arg6[%130, %c0_51] : memref<56x128xf32, #tpu.memory_space<vmem>>, vector<1x128xf32>
      %132 = arith.index_cast %41 : i32 to index
      %c9 = arith.constant 9 : index
      %c0_52 = arith.constant 0 : index
      %133 = vector.load %arg8[%132, %c9, %c0_52] : memref<16x12x128xf32, #tpu.memory_space<vmem>>, vector<1x1x128xf32>
      %134 = vector.shape_cast %133 : vector<1x1x128xf32> to vector<1x128xf32>
      %135 = vector.shape_cast %131 : vector<1x128xf32> to vector<1x1x128xf32>
      tpu.vector_store %arg8[%132, %c9, %c0_52], %135 {strides = array<i32>} : memref<16x12x128xf32, #tpu.memory_space<vmem>>, vector<1x1x128xf32>,
      %c4_i32_53 = arith.constant 4 : i32
      %136 = arith.addi %45, %c4_i32_53 : i32
      %137 = arith.index_cast %136 : i32 to index
      %138 = memref.load %arg2[%137] : memref<96xi32, #tpu.memory_space<smem>>
      %139 = arith.index_cast %138 : i32 to index
      %c0_54 = arith.constant 0 : index
      %140 = vector.load %arg6[%139, %c0_54] : memref<56x128xf32, #tpu.memory_space<vmem>>, vector<1x128xf32>
      %141 = arith.index_cast %41 : i32 to index
      %c10 = arith.constant 10 : index
      %c0_55 = arith.constant 0 : index
      %142 = vector.load %arg8[%141, %c10, %c0_55] : memref<16x12x128xf32, #tpu.memory_space<vmem>>, vector<1x1x128xf32>
      %143 = vector.shape_cast %142 : vector<1x1x128xf32> to vector<1x128xf32>
      %144 = vector.shape_cast %140 : vector<1x128xf32> to vector<1x1x128xf32>
      tpu.vector_store %arg8[%141, %c10, %c0_55], %144 {strides = array<i32>} : memref<16x12x128xf32, #tpu.memory_space<vmem>>, vector<1x1x128xf32>,
      %c5_i32_56 = arith.constant 5 : i32
      %145 = arith.addi %45, %c5_i32_56 : i32
      %146 = arith.index_cast %145 : i32 to index
      %147 = memref.load %arg2[%146] : memref<96xi32, #tpu.memory_space<smem>>
      %148 = arith.index_cast %147 : i32 to index
      %c0_57 = arith.constant 0 : index
      %149 = vector.load %arg6[%148, %c0_57] : memref<56x128xf32, #tpu.memory_space<vmem>>, vector<1x128xf32>
      %150 = arith.index_cast %41 : i32 to index
      %c11 = arith.constant 11 : index
      %c0_58 = arith.constant 0 : index
      %151 = vector.load %arg8[%150, %c11, %c0_58] : memref<16x12x128xf32, #tpu.memory_space<vmem>>, vector<1x1x128xf32>
      %152 = vector.shape_cast %151 : vector<1x1x128xf32> to vector<1x128xf32>
      %153 = vector.shape_cast %149 : vector<1x128xf32> to vector<1x1x128xf32>
      tpu.vector_store %arg8[%150, %c11, %c0_58], %153 {strides = array<i32>} : memref<16x12x128xf32, #tpu.memory_space<vmem>>, vector<1x1x128xf32>,
      %c2_i32_59 = arith.constant 2 : i32
      %154 = arith.muli %c2_i32_59, %40 : i32
      %c1_i32_60 = arith.constant 1 : i32
      %155 = arith.addi %154, %c1_i32_60 : i32
      %156 = arith.addi %0, %155 : i32
      %c6_i32_61 = arith.constant 6 : i32
      %157 = arith.muli %156, %c6_i32_61 : i32
      %158 = arith.addi %0, %155 : i32
      %c6_i32_62 = arith.constant 6 : i32
      %159 = arith.muli %158, %c6_i32_62 : i32
      %c0_i32_63 = arith.constant 0 : i32
      %160 = arith.addi %157, %c0_i32_63 : i32
      %161 = arith.index_cast %160 : i32 to index
      %162 = memref.load %arg1[%161] : memref<96xi32, #tpu.memory_space<smem>>
      %163 = arith.index_cast %162 : i32 to index
      %c0_64 = arith.constant 0 : index
      %164 = vector.load %arg5[%163, %c0_64] : memref<56x128xf32, #tpu.memory_space<vmem>>, vector<1x128xf32>
      %165 = arith.index_cast %155 : i32 to index
      %c0_65 = arith.constant 0 : index
      %c0_66 = arith.constant 0 : index
      %166 = vector.load %arg8[%165, %c0_65, %c0_66] : memref<16x12x128xf32, #tpu.memory_space<vmem>>, vector<1x1x128xf32>
      %167 = vector.shape_cast %166 : vector<1x1x128xf32> to vector<1x128xf32>
      %168 = vector.shape_cast %164 : vector<1x128xf32> to vector<1x1x128xf32>
      tpu.vector_store %arg8[%165, %c0_65, %c0_66], %168 {strides = array<i32>} : memref<16x12x128xf32, #tpu.memory_space<vmem>>, vector<1x1x128xf32>,
      %c1_i32_67 = arith.constant 1 : i32
      %169 = arith.addi %157, %c1_i32_67 : i32
      %170 = arith.index_cast %169 : i32 to index
      %171 = memref.load %arg1[%170] : memref<96xi32, #tpu.memory_space<smem>>
      %172 = arith.index_cast %171 : i32 to index
      %c0_68 = arith.constant 0 : index
      %173 = vector.load %arg5[%172, %c0_68] : memref<56x128xf32, #tpu.memory_space<vmem>>, vector<1x128xf32>
      %174 = arith.index_cast %155 : i32 to index
      %c1_69 = arith.constant 1 : index
      %c0_70 = arith.constant 0 : index
      %175 = vector.load %arg8[%174, %c1_69, %c0_70] : memref<16x12x128xf32, #tpu.memory_space<vmem>>, vector<1x1x128xf32>
      %176 = vector.shape_cast %175 : vector<1x1x128xf32> to vector<1x128xf32>
      %177 = vector.shape_cast %173 : vector<1x128xf32> to vector<1x1x128xf32>
      tpu.vector_store %arg8[%174, %c1_69, %c0_70], %177 {strides = array<i32>} : memref<16x12x128xf32, #tpu.memory_space<vmem>>, vector<1x1x128xf32>,
      %c2_i32_71 = arith.constant 2 : i32
      %178 = arith.addi %157, %c2_i32_71 : i32
      %179 = arith.index_cast %178 : i32 to index
      %180 = memref.load %arg1[%179] : memref<96xi32, #tpu.memory_space<smem>>
      %181 = arith.index_cast %180 : i32 to index
      %c0_72 = arith.constant 0 : index
      %182 = vector.load %arg5[%181, %c0_72] : memref<56x128xf32, #tpu.memory_space<vmem>>, vector<1x128xf32>
      %183 = arith.index_cast %155 : i32 to index
      %c2_73 = arith.constant 2 : index
      %c0_74 = arith.constant 0 : index
      %184 = vector.load %arg8[%183, %c2_73, %c0_74] : memref<16x12x128xf32, #tpu.memory_space<vmem>>, vector<1x1x128xf32>
      %185 = vector.shape_cast %184 : vector<1x1x128xf32> to vector<1x128xf32>
      %186 = vector.shape_cast %182 : vector<1x128xf32> to vector<1x1x128xf32>
      tpu.vector_store %arg8[%183, %c2_73, %c0_74], %186 {strides = array<i32>} : memref<16x12x128xf32, #tpu.memory_space<vmem>>, vector<1x1x128xf32>,
      %c3_i32_75 = arith.constant 3 : i32
      %187 = arith.addi %157, %c3_i32_75 : i32
      %188 = arith.index_cast %187 : i32 to index
      %189 = memref.load %arg1[%188] : memref<96xi32, #tpu.memory_space<smem>>
      %190 = arith.index_cast %189 : i32 to index
      %c0_76 = arith.constant 0 : index
      %191 = vector.load %arg5[%190, %c0_76] : memref<56x128xf32, #tpu.memory_space<vmem>>, vector<1x128xf32>
      %192 = arith.index_cast %155 : i32 to index
      %c3_77 = arith.constant 3 : index
      %c0_78 = arith.constant 0 : index
      %193 = vector.load %arg8[%192, %c3_77, %c0_78] : memref<16x12x128xf32, #tpu.memory_space<vmem>>, vector<1x1x128xf32>
      %194 = vector.shape_cast %193 : vector<1x1x128xf32> to vector<1x128xf32>
      %195 = vector.shape_cast %191 : vector<1x128xf32> to vector<1x1x128xf32>
      tpu.vector_store %arg8[%192, %c3_77, %c0_78], %195 {strides = array<i32>} : memref<16x12x128xf32, #tpu.memory_space<vmem>>, vector<1x1x128xf32>,
      %c4_i32_79 = arith.constant 4 : i32
      %196 = arith.addi %157, %c4_i32_79 : i32
      %197 = arith.index_cast %196 : i32 to index
      %198 = memref.load %arg1[%197] : memref<96xi32, #tpu.memory_space<smem>>
      %199 = arith.index_cast %198 : i32 to index
      %c0_80 = arith.constant 0 : index
      %200 = vector.load %arg5[%199, %c0_80] : memref<56x128xf32, #tpu.memory_space<vmem>>, vector<1x128xf32>
      %201 = arith.index_cast %155 : i32 to index
      %c4_81 = arith.constant 4 : index
      %c0_82 = arith.constant 0 : index
      %202 = vector.load %arg8[%201, %c4_81, %c0_82] : memref<16x12x128xf32, #tpu.memory_space<vmem>>, vector<1x1x128xf32>
      %203 = vector.shape_cast %202 : vector<1x1x128xf32> to vector<1x128xf32>
      %204 = vector.shape_cast %200 : vector<1x128xf32> to vector<1x1x128xf32>
      tpu.vector_store %arg8[%201, %c4_81, %c0_82], %204 {strides = array<i32>} : memref<16x12x128xf32, #tpu.memory_space<vmem>>, vector<1x1x128xf32>,
      %c5_i32_83 = arith.constant 5 : i32
      %205 = arith.addi %157, %c5_i32_83 : i32
      %206 = arith.index_cast %205 : i32 to index
      %207 = memref.load %arg1[%206] : memref<96xi32, #tpu.memory_space<smem>>
      %208 = arith.index_cast %207 : i32 to index
      %c0_84 = arith.constant 0 : index
      %209 = vector.load %arg5[%208, %c0_84] : memref<56x128xf32, #tpu.memory_space<vmem>>, vector<1x128xf32>
      %210 = arith.index_cast %155 : i32 to index
      %c5_85 = arith.constant 5 : index
      %c0_86 = arith.constant 0 : index
      %211 = vector.load %arg8[%210, %c5_85, %c0_86] : memref<16x12x128xf32, #tpu.memory_space<vmem>>, vector<1x1x128xf32>
      %212 = vector.shape_cast %211 : vector<1x1x128xf32> to vector<1x128xf32>
      %213 = vector.shape_cast %209 : vector<1x128xf32> to vector<1x1x128xf32>
      tpu.vector_store %arg8[%210, %c5_85, %c0_86], %213 {strides = array<i32>} : memref<16x12x128xf32, #tpu.memory_space<vmem>>, vector<1x1x128xf32>,
      %c0_i32_87 = arith.constant 0 : i32
      %214 = arith.addi %159, %c0_i32_87 : i32
      %215 = arith.index_cast %214 : i32 to index
      %216 = memref.load %arg2[%215] : memref<96xi32, #tpu.memory_space<smem>>
      %217 = arith.index_cast %216 : i32 to index
      %c0_88 = arith.constant 0 : index
      %218 = vector.load %arg6[%217, %c0_88] : memref<56x128xf32, #tpu.memory_space<vmem>>, vector<1x128xf32>
      %219 = arith.index_cast %155 : i32 to index
      %c6_89 = arith.constant 6 : index
      %c0_90 = arith.constant 0 : index
      %220 = vector.load %arg8[%219, %c6_89, %c0_90] : memref<16x12x128xf32, #tpu.memory_space<vmem>>, vector<1x1x128xf32>
      %221 = vector.shape_cast %220 : vector<1x1x128xf32> to vector<1x128xf32>
      %222 = vector.shape_cast %218 : vector<1x128xf32> to vector<1x1x128xf32>
      tpu.vector_store %arg8[%219, %c6_89, %c0_90], %222 {strides = array<i32>} : memref<16x12x128xf32, #tpu.memory_space<vmem>>, vector<1x1x128xf32>,
      %c1_i32_91 = arith.constant 1 : i32
      %223 = arith.addi %159, %c1_i32_91 : i32
      %224 = arith.index_cast %223 : i32 to index
      %225 = memref.load %arg2[%224] : memref<96xi32, #tpu.memory_space<smem>>
      %226 = arith.index_cast %225 : i32 to index
      %c0_92 = arith.constant 0 : index
      %227 = vector.load %arg6[%226, %c0_92] : memref<56x128xf32, #tpu.memory_space<vmem>>, vector<1x128xf32>
      %228 = arith.index_cast %155 : i32 to index
      %c7_93 = arith.constant 7 : index
      %c0_94 = arith.constant 0 : index
      %229 = vector.load %arg8[%228, %c7_93, %c0_94] : memref<16x12x128xf32, #tpu.memory_space<vmem>>, vector<1x1x128xf32>
      %230 = vector.shape_cast %229 : vector<1x1x128xf32> to vector<1x128xf32>
      %231 = vector.shape_cast %227 : vector<1x128xf32> to vector<1x1x128xf32>
      tpu.vector_store %arg8[%228, %c7_93, %c0_94], %231 {strides = array<i32>} : memref<16x12x128xf32, #tpu.memory_space<vmem>>, vector<1x1x128xf32>,
      %c2_i32_95 = arith.constant 2 : i32
      %232 = arith.addi %159, %c2_i32_95 : i32
      %233 = arith.index_cast %232 : i32 to index
      %234 = memref.load %arg2[%233] : memref<96xi32, #tpu.memory_space<smem>>
      %235 = arith.index_cast %234 : i32 to index
      %c0_96 = arith.constant 0 : index
      %236 = vector.load %arg6[%235, %c0_96] : memref<56x128xf32, #tpu.memory_space<vmem>>, vector<1x128xf32>
      %237 = arith.index_cast %155 : i32 to index
      %c8_97 = arith.constant 8 : index
      %c0_98 = arith.constant 0 : index
      %238 = vector.load %arg8[%237, %c8_97, %c0_98] : memref<16x12x128xf32, #tpu.memory_space<vmem>>, vector<1x1x128xf32>
      %239 = vector.shape_cast %238 : vector<1x1x128xf32> to vector<1x128xf32>
      %240 = vector.shape_cast %236 : vector<1x128xf32> to vector<1x1x128xf32>
      tpu.vector_store %arg8[%237, %c8_97, %c0_98], %240 {strides = array<i32>} : memref<16x12x128xf32, #tpu.memory_space<vmem>>, vector<1x1x128xf32>,
      %c3_i32_99 = arith.constant 3 : i32
      %241 = arith.addi %159, %c3_i32_99 : i32
      %242 = arith.index_cast %241 : i32 to index
      %243 = memref.load %arg2[%242] : memref<96xi32, #tpu.memory_space<smem>>
      %244 = arith.index_cast %243 : i32 to index
      %c0_100 = arith.constant 0 : index
      %245 = vector.load %arg6[%244, %c0_100] : memref<56x128xf32, #tpu.memory_space<vmem>>, vector<1x128xf32>
      %246 = arith.index_cast %155 : i32 to index
      %c9_101 = arith.constant 9 : index
      %c0_102 = arith.constant 0 : index
      %247 = vector.load %arg8[%246, %c9_101, %c0_102] : memref<16x12x128xf32, #tpu.memory_space<vmem>>, vector<1x1x128xf32>
      %248 = vector.shape_cast %247 : vector<1x1x128xf32> to vector<1x128xf32>
      %249 = vector.shape_cast %245 : vector<1x128xf32> to vector<1x1x128xf32>
      tpu.vector_store %arg8[%246, %c9_101, %c0_102], %249 {strides = array<i32>} : memref<16x12x128xf32, #tpu.memory_space<vmem>>, vector<1x1x128xf32>,
      %c4_i32_103 = arith.constant 4 : i32
      %250 = arith.addi %159, %c4_i32_103 : i32
      %251 = arith.index_cast %250 : i32 to index
      %252 = memref.load %arg2[%251] : memref<96xi32, #tpu.memory_space<smem>>
      %253 = arith.index_cast %252 : i32 to index
      %c0_104 = arith.constant 0 : index
      %254 = vector.load %arg6[%253, %c0_104] : memref<56x128xf32, #tpu.memory_space<vmem>>, vector<1x128xf32>
      %255 = arith.index_cast %155 : i32 to index
      %c10_105 = arith.constant 10 : index
      %c0_106 = arith.constant 0 : index
      %256 = vector.load %arg8[%255, %c10_105, %c0_106] : memref<16x12x128xf32, #tpu.memory_space<vmem>>, vector<1x1x128xf32>
      %257 = vector.shape_cast %256 : vector<1x1x128xf32> to vector<1x128xf32>
      %258 = vector.shape_cast %254 : vector<1x128xf32> to vector<1x1x128xf32>
      tpu.vector_store %arg8[%255, %c10_105, %c0_106], %258 {strides = array<i32>} : memref<16x12x128xf32, #tpu.memory_space<vmem>>, vector<1x1x128xf32>,
      %c5_i32_107 = arith.constant 5 : i32
      %259 = arith.addi %159, %c5_i32_107 : i32
      %260 = arith.index_cast %259 : i32 to index
      %261 = memref.load %arg2[%260] : memref<96xi32, #tpu.memory_space<smem>>
      %262 = arith.index_cast %261 : i32 to index
      %c0_108 = arith.constant 0 : index
      %263 = vector.load %arg6[%262, %c0_108] : memref<56x128xf32, #tpu.memory_space<vmem>>, vector<1x128xf32>
      %264 = arith.index_cast %155 : i32 to index
      %c11_109 = arith.constant 11 : index
      %c0_110 = arith.constant 0 : index
      %265 = vector.load %arg8[%264, %c11_109, %c0_110] : memref<16x12x128xf32, #tpu.memory_space<vmem>>, vector<1x1x128xf32>
      %266 = vector.shape_cast %265 : vector<1x1x128xf32> to vector<1x128xf32>
      %267 = vector.shape_cast %263 : vector<1x128xf32> to vector<1x1x128xf32>
      tpu.vector_store %arg8[%264, %c11_109, %c0_110], %267 {strides = array<i32>} : memref<16x12x128xf32, #tpu.memory_space<vmem>>, vector<1x1x128xf32>,
    }
    %c8_i32_0 = arith.constant 8 : i32
    %c0 = arith.constant 0 : index
    %c0_1 = arith.constant 0 : index
    %c0_2 = arith.constant 0 : index
    %2 = vector.load %arg8[%c0, %c0_1, %c0_2] : memref<16x12x128xf32, #tpu.memory_space<vmem>>, vector<16x6x128xf32>
    %cst = arith.constant dense<0.000000e+00> : vector<16x128xf32>
    %3 = vector.multi_reduction <add>, %2, %cst [1] : vector<16x6x128xf32> to vector<16x128xf32>
    %c0_3 = arith.constant 0 : index
    %c0_4 = arith.constant 0 : index
    %4 = vector.load %arg3[%c0_3, %c0_4] : memref<16x1xf32, #tpu.memory_space<vmem>>, vector<16x1xf32>
    %5 = vector.broadcast %4 : vector<16x1xf32> to vector<16x128xf32>
    %6 = arith.mulf %3, %5 : vector<16x128xf32>
    %c0_5 = arith.constant 0 : index
    %c6 = arith.constant 6 : index
    %c0_6 = arith.constant 0 : index
    %7 = vector.load %arg8[%c0_5, %c6, %c0_6] : memref<16x12x128xf32, #tpu.memory_space<vmem>>, vector<16x6x128xf32>
    %8 = vector.shape_cast %6 : vector<16x128xf32> to vector<16x1x128xf32>
    %9 = vector.broadcast %8 : vector<16x1x128xf32> to vector<16x6x128xf32>
    %10 = arith.mulf %7, %9 : vector<16x6x128xf32>
    %cst_7 = arith.constant dense<0.000000e+00> : vector<16x6xf32>
    %11 = vector.multi_reduction <add>, %10, %cst_7 [2] : vector<16x6x128xf32> to vector<16x6xf32>
    %12 = tpu.iota {dimensions = array<i32: 1>} : vector<16x6xi32>
    %c0_i32_8 = arith.constant 0 : i32
    %13 = vector.broadcast %c0_i32_8 : i32 to vector<16x6xi32>
    %14 = arith.cmpi eq, %12, %13 : vector<16x6xi32>
    %cst_9 = arith.constant 0.000000e+00 : f32
    %15 = vector.broadcast %cst_9 : f32 to vector<16x6xf32>
    %16 = arith.subf %15, %11 : vector<16x6xf32>
    %17 = arith.select %14, %11, %16 : vector<16x6xi1>, vector<16x6xf32>
    %cst_10 = arith.constant -1.000000e+01 : f32
    %cst_11 = arith.constant 1.000000e+01 : f32
    %18 = vector.broadcast %cst_10 : f32 to vector<16x6xf32>
    %19 = arith.maximumf %18, %17 : vector<16x6xf32>
    %20 = vector.broadcast %cst_11 : f32 to vector<16x6xf32>
    %21 = arith.minimumf %20, %19 : vector<16x6xf32>
    %cst_12 = arith.constant 0.000000e+00 : f32
    %22 = vector.broadcast %cst_12 : f32 to vector<16x6xf32>
    %23 = arith.subf %22, %21 : vector<16x6xf32>
    %24 = math.exp %23 : vector<16x6xf32>
    %25 = math.log1p %24 : vector<16x6xf32>
    %c0_13 = arith.constant 0 : index
    %c0_14 = arith.constant 0 : index
    %26 = vector.load %arg4[%c0_13, %c0_14] : memref<16x6xf32, #tpu.memory_space<vmem>>, vector<16x6xf32>
    %27 = arith.mulf %25, %26 : vector<16x6xf32>
    %28 = vector.shape_cast %27 : vector<16x6xf32> to vector<1x16x6xf32>
    %cst_15 = arith.constant dense<0.000000e+00> : vector<1xf32>
    %29 = vector.multi_reduction <add>, %28, %cst_15 [1, 2] : vector<1x16x6xf32> to vector<1xf32>
    %30 = vector.shape_cast %29 : vector<1xf32> to vector<1x1x1xf32>
    %31 = vector.extract %30[0, 0, 0] : f32 from vector<1x1x1xf32>
    %32 = tpu.iota {dimensions = array<i32: 2>} : vector<1x1x128xi32>
    %c0_i32_16 = arith.constant 0 : i32
    %33 = vector.broadcast %c0_i32_16 : i32 to vector<1x1x128xi32>
    %34 = arith.cmpi eq, %32, %33 : vector<1x1x128xi32>
    %cst_17 = arith.constant 0.000000e+00 : f32
    %35 = vector.broadcast %31 : f32 to vector<1x1x128xf32>
    %36 = vector.broadcast %cst_17 : f32 to vector<1x1x128xf32>
    %37 = arith.select %34, %35, %36 : vector<1x1x128xi1>, vector<1x1x128xf32>
    %c0_18 = arith.constant 0 : index
    %c0_19 = arith.constant 0 : index
    %c0_20 = arith.constant 0 : index
    %38 = vector.load %arg7[%c0_18, %c0_19, %c0_20] : memref<1x1x128xf32, #tpu.memory_space<vmem>>, vector<1x1x128xf32>
    tpu.vector_store %arg7[%c0_18, %c0_19, %c0_20], %37 {strides = array<i32>} : memref<1x1x128xf32, #tpu.memory_space<vmem>>, vector<1x1x128xf32>,
    return
  }
  func.func @transform_0(%arg0: i32, %arg1: memref<96xi32, #tpu.memory_space<smem>>, %arg2: memref<96xi32, #tpu.memory_space<smem>>) -> (i32, i32) {
    %c0_i32 = arith.constant 0 : i32
    %c0_i32_0 = arith.constant 0 : i32
    return %arg0, %c0_i32 : i32, i32
  }
  func.func @transform_1(%arg0: i32, %arg1: memref<96xi32, #tpu.memory_space<smem>>, %arg2: memref<96xi32, #tpu.memory_space<smem>>) -> (i32, i32) {
    %c0_i32 = arith.constant 0 : i32
    %c0_i32_0 = arith.constant 0 : i32
    return %arg0, %c0_i32 : i32, i32
  }
  func.func @transform_2(%arg0: i32, %arg1: memref<96xi32, #tpu.memory_space<smem>>, %arg2: memref<96xi32, #tpu.memory_space<smem>>) -> (i32, i32) {
    %c0_i32 = arith.constant 0 : i32
    %c0_i32_0 = arith.constant 0 : i32
    %c0_i32_1 = arith.constant 0 : i32
    return %c0_i32, %c0_i32_0 : i32, i32
  }
  func.func @transform_3(%arg0: i32, %arg1: memref<96xi32, #tpu.memory_space<smem>>, %arg2: memref<96xi32, #tpu.memory_space<smem>>) -> (i32, i32) {
    %c0_i32 = arith.constant 0 : i32
    %c0_i32_0 = arith.constant 0 : i32
    %c0_i32_1 = arith.constant 0 : i32
    return %c0_i32, %c0_i32_0 : i32, i32
  }
  func.func @transform_4(%arg0: i32, %arg1: memref<96xi32, #tpu.memory_space<smem>>, %arg2: memref<96xi32, #tpu.memory_space<smem>>) -> (i32, i32, i32) {
    %c0_i32 = arith.constant 0 : i32
    %c0_i32_0 = arith.constant 0 : i32
    %c0_i32_1 = arith.constant 0 : i32
    return %arg0, %c0_i32, %c0_i32_0 : i32, i32, i32
  }
}

</mosaic_0001>

<llo_original>
// kernel: tpu_custom_call.1
$region0: #{tpu_custom_call.1}
  #allocation0 [shape = 'u32[]', space=smem, size = 0x4, offset = 0x4, fixed_abs, tag = 'smem constant byte address 0x4 - core index']
  #allocation1 [shape = 'u32[144,128]{1,0:T(1,128)}', space=vmem, size = 0x12000, scoped, tag = 'internal scratch']
  #allocation2 [shape = 'f32[16,12,128]{2,1,0:T(8,128)}', space=vmem, size = 0x20000, scoped, tag = 'scratch operand']
  #allocation3 [shape = 's32[1]{0}', space=sflag, size = 0x4, scoped, tag = 'scoped memory for tpu_custom_call.1']
  #allocation4 [shape = 'u8[512]{0}', space=smem, size = 0x200, scoped, tag = 'prefetched SMEM operand 0']
  #allocation5 [shape = 'u8[512]{0}', space=smem, size = 0x200, scoped, tag = 'prefetched SMEM operand 1']
  %s0 = inlined_call_operand.hbm [shape: s32[96], index: 0, kind: input, shape index: {}]
  %s1 = inlined_call_operand.hbm [shape: s32[96], index: 1, kind: input, shape index: {}]
  %s2 = inlined_call_operand.vmem [shape: f32[16,1], index: 2, kind: input, shape index: {}]
  %s3 = inlined_call_operand.vmem [shape: f32[16,6], index: 3, kind: input, shape index: {}]
  %s4 = inlined_call_operand.vmem [shape: f32[56,128], index: 4, kind: input, shape index: {}]
  %s5 = inlined_call_operand.hbm [shape: f32[56,128], index: 5, kind: input, shape index: {}]
  %s6 = inlined_call_operand.hbm [shape: f32[1,1,128], index: 6, kind: output, shape index: {}]
  %s7 = sld [smem:[#allocation0]]
  $region37: #{tpu_custom_call.1} parent=0
    _
  %s9 = ssub.s32 1, %s7
  %s10 = scalar_select 0, %s9, %s7
  %12 = dma.hbm_to_smem %s0, 16, [#allocation4], [#allocation3]
  %14 = dma.hbm_to_smem %s1, 16, [#allocation5], [#allocation3]
  %15 = dma.done [#allocation3], 32
  %16 = sfence
  $region1: #{tpu_custom_call.1} parent=0
    #allocation6 [shape = 'u8[28672]{0}', space=vmem, size = 0x7000, scoped, tag = 'input window, operand 5, single buffered']
    #allocation7 [shape = 's32[1]{0}', space=sflag, size = 0x4, scoped, tag = 'scoped memory for tpu_custom_call.1']
    #allocation8 [shape = 's32[1]{0}', space=sflag, size = 0x4, scoped, tag = 'scoped memory for tpu_custom_call.1']
    #allocation9 [shape = 'u8[512]{0}', space=vmem, size = 0x400, scoped, tag = 'output window, operand 0, single buffered']
    %17 = vsyncpa [#allocation7], 0
    %18 = vsyncpa [#allocation8], 0
    // Predicated region
    $region2: #{tpu_custom_call.1} parent=1 // pred_check
      _
    $region3: #{tpu_custom_call.1} parent=1 // pred_check_branch
      %20 = sbr.rel (0) target = $region5
    $region4: #{tpu_custom_call.1} parent=1 // pred_region
      _
    $region5: #{tpu_custom_call.1} parent=1 // pred_fallthru
      _
    // Predicated region
    $region6: #{tpu_custom_call.1} parent=1 // pred_check
      _
    $region7: #{tpu_custom_call.1} parent=1 // pred_check_branch
      %22 = sbr.rel (0) target = $region9
    $region8: #{tpu_custom_call.1} parent=1 // pred_region
      _
    $region9: #{tpu_custom_call.1} parent=1 // pred_fallthru
      _
    // Predicated region
    $region10: #{tpu_custom_call.1} parent=1 // pred_check
      _
    $region11: #{tpu_custom_call.1} parent=1 // pred_check_branch
      %24 = sbr.rel (0) target = $region13
    $region12: #{tpu_custom_call.1} parent=1 // pred_region
      _
    $region13: #{tpu_custom_call.1} parent=1 // pred_fallthru
      _
    // Predicated region
    $region14: #{tpu_custom_call.1} parent=1 // pred_check
      _
    $region15: #{tpu_custom_call.1} parent=1 // pred_check_branch
      %26 = sbr.rel (0) target = $region17
    $region16: #{tpu_custom_call.1} parent=1 // pred_region
      %s28 = ssub.s32 896, 896
      %29 = vsyncadd [#allocation7], %s28
      %s30 = sshll.u32 [#allocation6], 4
      %s31 = int_to_ptr.vmem [resolvable:$true] %s30
      %36 = dma.hbm_to_vmem [thread:$0]  %s5, 896, %s31, [#allocation7], 128, 128, 8
    $region17: #{tpu_custom_call.1} parent=1 // pred_fallthru
      _
    // Predicated region
    $region18: #{tpu_custom_call.1} parent=1 // pred_check
      _
    $region19: #{tpu_custom_call.1} parent=1 // pred_check_branch
      %38 = sbr.rel (0) target = $region21
    $region20: #{tpu_custom_call.1} parent=1 // pred_region
      %39 = dma.done [#allocation7], 896
    $region21: #{tpu_custom_call.1} parent=1 // pred_fallthru
      _
    %s40 = smul.u32 0, 16
    loop: start=0, step=1, limit=8
    $region22: #{tpu_custom_call.1} parent=1 // loop_pre_header
      _
    $region23: #{tpu_custom_call.1} parent=1 // loop_header
      %s42 = sphi 0, %s46
      %p43 = scmp.ge.s32.totalorder %s42, 8
    $region24: #{tpu_custom_call.1} parent=1 // loop_header_branch
      %45 = sbr.rel (%p43) target = $region28
    $region25: #{tpu_custom_call.1} parent=1 // loop_body
      %s47 = smul.u32 %s42, 2
      %s48 = sadd.s32 %s40, %s47
      %s49 = smul.u32 %s48, 6
      %s50 = sld [smem:[#allocation4 + %s49]]
      %s51 = scalar_lea.vmem %s4, %s50
      %v52 = vld [vmem:[%s51] sm:$0x1]
      %s53 = smul.u32 %s47, 16
      %s54 = scalar_lea.vmem [#allocation2], %s53
      %55 = vst [vmem:[%s54] sm:$0x1] %v52
      %s56 = sadd.s32 %s49, 1
      %s57 = sld [smem:[#allocation4 + %s56]]
      %s58 = scalar_lea.vmem %s4, %s57
      %v59 = vld [vmem:[%s58] sm:$0x1]
      %60 = vst [vmem:[%s54 + $0x1] sm:$0x1] %v59
      %s61 = sadd.s32 %s49, 2
      %s62 = sld [smem:[#allocation4 + %s61]]
      %s63 = scalar_lea.vmem %s4, %s62
      %v64 = vld [vmem:[%s63] sm:$0x1]
      %65 = vst [vmem:[%s54 + $0x2] sm:$0x1] %v64
      %s66 = sadd.s32 %s49, 3
      %s67 = sld [smem:[#allocation4 + %s66]]
      %s68 = scalar_lea.vmem %s4, %s67
      %v69 = vld [vmem:[%s68] sm:$0x1]
      %70 = vst [vmem:[%s54 + $0x3] sm:$0x1] %v69
      %s71 = sadd.s32 %s49, 4
      %s72 = sld [smem:[#allocation4 + %s71]]
      %s73 = scalar_lea.vmem %s4, %s72
      %v74 = vld [vmem:[%s73] sm:$0x1]
      %75 = vst [vmem:[%s54 + $0x4] sm:$0x1] %v74
      %s76 = sadd.s32 %s49, 5
      %s77 = sld [smem:[#allocation4 + %s76]]
      %s78 = scalar_lea.vmem %s4, %s77
      %v79 = vld [vmem:[%s78] sm:$0x1]
      %80 = vst [vmem:[%s54 + $0x5] sm:$0x1] %v79
      %s81 = sld [smem:[#allocation5 + %s49]]
      %s82 = scalar_lea.vmem [#allocation6], %s81
      %v83 = vld [vmem:[%s82] sm:$0x1]
      %84 = vst [vmem:[%s54 + $0x6] sm:$0x1] %v83
      %s85 = sld [smem:[#allocation5 + %s56]]
      %s86 = scalar_lea.vmem [#allocation6], %s85
      %v87 = vld [vmem:[%s86] sm:$0x1]
      %88 = vst [vmem:[%s54 + $0x7] sm:$0x1] %v87
      %s89 = sld [smem:[#allocation5 + %s61]]
      %s90 = scalar_lea.vmem [#allocation6], %s89
      %v91 = vld [vmem:[%s90] sm:$0x1]
      %92 = vst [vmem:[%s54 + $0x8] sm:$0x1] %v91
      %s93 = sld [smem:[#allocation5 + %s66]]
      %s94 = scalar_lea.vmem [#allocation6], %s93
      %v95 = vld [vmem:[%s94] sm:$0x1]
      %96 = vst [vmem:[%s54 + $0x9] sm:$0x1] %v95
      %s97 = sld [smem:[#allocation5 + %s71]]
      %s98 = scalar_lea.vmem [#allocation6], %s97
      %v99 = vld [vmem:[%s98] sm:$0x1]
      %100 = vst [vmem:[%s54 + $0xa] sm:$0x1] %v99
      %s101 = sld [smem:[#allocation5 + %s76]]
      %s102 = scalar_lea.vmem [#allocation6], %s101
      %v103 = vld [vmem:[%s102] sm:$0x1]
      %104 = vst [vmem:[%s54 + $0xb] sm:$0x1] %v103
      %s105 = sadd.s32 %s47, 1
      %s106 = sadd.s32 %s40, %s105
      %s107 = smul.u32 %s106, 6
      %s108 = sld [smem:[#allocation4 + %s107]]
      %s109 = scalar_lea.vmem %s4, %s108
      %v110 = vld [vmem:[%s109] sm:$0x1]
      %s111 = smul.u32 %s105, 16
      %s112 = scalar_lea.vmem [#allocation2], %s111
      %113 = vst [vmem:[%s112] sm:$0x1] %v110
      %s114 = sadd.s32 %s107, 1
      %s115 = sld [smem:[#allocation4 + %s114]]
      %s116 = scalar_lea.vmem %s4, %s115
      %v117 = vld [vmem:[%s116] sm:$0x1]
      %118 = vst [vmem:[%s112 + $0x1] sm:$0x1] %v117
      %s119 = sadd.s32 %s107, 2
      %s120 = sld [smem:[#allocation4 + %s119]]
      %s121 = scalar_lea.vmem %s4, %s120
      %v122 = vld [vmem:[%s121] sm:$0x1]
      %123 = vst [vmem:[%s112 + $0x2] sm:$0x1] %v122
      %s124 = sadd.s32 %s107, 3
      %s125 = sld [smem:[#allocation4 + %s124]]
      %s126 = scalar_lea.vmem %s4, %s125
      %v127 = vld [vmem:[%s126] sm:$0x1]
      %128 = vst [vmem:[%s112 + $0x3] sm:$0x1] %v127
      %s129 = sadd.s32 %s107, 4
      %s130 = sld [smem:[#allocation4 + %s129]]
      %s131 = scalar_lea.vmem %s4, %s130
      %v132 = vld [vmem:[%s131] sm:$0x1]
      %133 = vst [vmem:[%s112 + $0x4] sm:$0x1] %v132
      %s134 = sadd.s32 %s107, 5
      %s135 = sld [smem:[#allocation4 + %s134]]
      %s136 = scalar_lea.vmem %s4, %s135
      %v137 = vld [vmem:[%s136] sm:$0x1]
      %138 = vst [vmem:[%s112 + $0x5] sm:$0x1] %v137
      %s139 = sld [smem:[#allocation5 + %s107]]
      %s140 = scalar_lea.vmem [#allocation6], %s139
      %v141 = vld [vmem:[%s140] sm:$0x1]
      %142 = vst [vmem:[%s112 + $0x6] sm:$0x1] %v141
      %s143 = sld [smem:[#allocation5 + %s114]]
      %s144 = scalar_lea.vmem [#allocation6], %s143
      %v145 = vld [vmem:[%s144] sm:$0x1]
      %146 = vst [vmem:[%s112 + $0x7] sm:$0x1] %v145
      %s147 = sld [smem:[#allocation5 + %s119]]
      %s148 = scalar_lea.vmem [#allocation6], %s147
      %v149 = vld [vmem:[%s148] sm:$0x1]
      %150 = vst [vmem:[%s112 + $0x8] sm:$0x1] %v149
      %s151 = sld [smem:[#allocation5 + %s124]]
      %s152 = scalar_lea.vmem [#allocation6], %s151
      %v153 = vld [vmem:[%s152] sm:$0x1]
      %154 = vst [vmem:[%s112 + $0x9] sm:$0x1] %v153
      %s155 = sld [smem:[#allocation5 + %s129]]
      %s156 = scalar_lea.vmem [#allocation6], %s155
      %v157 = vld [vmem:[%s156] sm:$0x1]
      %158 = vst [vmem:[%s112 + $0xa] sm:$0x1] %v157
      %s159 = sld [smem:[#allocation5 + %s134]]
      %s160 = scalar_lea.vmem [#allocation6], %s159
      %v161 = vld [vmem:[%s160] sm:$0x1]
      %162 = vst [vmem:[%s112 + $0xb] sm:$0x1] %v161
    $region26: #{tpu_custom_call.1} parent=1 // loop_footer
      %s46 = sadd.s32 1, %s42
    $region27: #{tpu_custom_call.1} parent=1 // loop_footer_branch
      %41 = sbr.rel target = $region23
    $region28: #{tpu_custom_call.1} parent=1 // loop_exit
      _
    %v163 = vld [vmem:[#allocation2] sm:$0x3f]
    %v164 = vld [vmem:[#allocation2 + $0x10] sm:$0x3f]
    %v165 = vld [vmem:[#allocation2 + $0x20] sm:$0x3f]
    %v166 = vld [vmem:[#allocation2 + $0x30] sm:$0x3f]
    %v167 = vld [vmem:[#allocation2 + $0x40] sm:$0x3f]
    %v168 = vld [vmem:[#allocation2 + $0x50] sm:$0x3f]
    %v169 = vld [vmem:[#allocation2 + $0x60] sm:$0x3f]
    %v170 = vld [vmem:[#allocation2 + $0x70] sm:$0x3f]
    %v171 = vld [vmem:[#allocation2 + $0x80] sm:$0x3f]
    %v172 = vld [vmem:[#allocation2 + $0x90] sm:$0x3f]
    %v173 = vld [vmem:[#allocation2 + $0xa0] sm:$0x3f]
    %v174 = vld [vmem:[#allocation2 + $0xb0] sm:$0x3f]
    %v175 = vld [vmem:[#allocation2 + $0xc0] sm:$0x3f]
    %v176 = vld [vmem:[#allocation2 + $0xd0] sm:$0x3f]
    %v177 = vld [vmem:[#allocation2 + $0xe0] sm:$0x3f]
    %v178 = vld [vmem:[#allocation2 + $0xf0] sm:$0x3f]
    %vm179 = vcmask 1045504
    %v180 = vsel %vm179, %v163, 0.0
    %v181 = vrot.slane %v180, 4
    %v182 = vadd.f32 %v180, %v181
    %v183 = vrot.slane %v182, 2
    %v184 = vadd.f32 %v182, %v183
    %v185 = vrot.slane %v184, 1
    %v186 = vadd.f32 %v184, %v185
    %v187 = vsel %vm179, %v164, 0.0
    %v188 = vrot.slane %v187, 4
    %v189 = vadd.f32 %v187, %v188
    %v190 = vrot.slane %v189, 2
    %v191 = vadd.f32 %v189, %v190
    %v192 = vrot.slane %v191, 1
    %v193 = vadd.f32 %v191, %v192
    %v194 = vsel %vm179, %v165, 0.0
    %v195 = vrot.slane %v194, 4
    %v196 = vadd.f32 %v194, %v195
    %v197 = vrot.slane %v196, 2
    %v198 = vadd.f32 %v196, %v197
    %v199 = vrot.slane %v198, 1
    %v200 = vadd.f32 %v198, %v199
    %v201 = vsel %vm179, %v166, 0.0
    %v202 = vrot.slane %v201, 4
    %v203 = vadd.f32 %v201, %v202
    %v204 = vrot.slane %v203, 2
    %v205 = vadd.f32 %v203, %v204
    %v206 = vrot.slane %v205, 1
    %v207 = vadd.f32 %v205, %v206
    %v208 = vsel %vm179, %v167, 0.0
    %v209 = vrot.slane %v208, 4
    %v210 = vadd.f32 %v208, %v209
    %v211 = vrot.slane %v210, 2
    %v212 = vadd.f32 %v210, %v211
    %v213 = vrot.slane %v212, 1
    %v214 = vadd.f32 %v212, %v213
    %v215 = vsel %vm179, %v168, 0.0
    %v216 = vrot.slane %v215, 4
    %v217 = vadd.f32 %v215, %v216
    %v218 = vrot.slane %v217, 2
    %v219 = vadd.f32 %v217, %v218
    %v220 = vrot.slane %v219, 1
    %v221 = vadd.f32 %v219, %v220
    %v222 = vsel %vm179, %v169, 0.0
    %v223 = vrot.slane %v222, 4
    %v224 = vadd.f32 %v222, %v223
    %v225 = vrot.slane %v224, 2
    %v226 = vadd.f32 %v224, %v225
    %v227 = vrot.slane %v226, 1
    %v228 = vadd.f32 %v226, %v227
    %v229 = vsel %vm179, %v170, 0.0
    %v230 = vrot.slane %v229, 4
    %v231 = vadd.f32 %v229, %v230
    %v232 = vrot.slane %v231, 2
    %v233 = vadd.f32 %v231, %v232
    %v234 = vrot.slane %v233, 1
    %v235 = vadd.f32 %v233, %v234
    %v236 = vsel %vm179, %v171, 0.0
    %v237 = vrot.slane %v236, 4
    %v238 = vadd.f32 %v236, %v237
    %v239 = vrot.slane %v238, 2
    %v240 = vadd.f32 %v238, %v239
    %v241 = vrot.slane %v240, 1
    %v242 = vadd.f32 %v240, %v241
    %v243 = vsel %vm179, %v172, 0.0
    %v244 = vrot.slane %v243, 4
    %v245 = vadd.f32 %v243, %v244
    %v246 = vrot.slane %v245, 2
    %v247 = vadd.f32 %v245, %v246
    %v248 = vrot.slane %v247, 1
    %v249 = vadd.f32 %v247, %v248
    %v250 = vsel %vm179, %v173, 0.0
    %v251 = vrot.slane %v250, 4
    %v252 = vadd.f32 %v250, %v251
    %v253 = vrot.slane %v252, 2
    %v254 = vadd.f32 %v252, %v253
    %v255 = vrot.slane %v254, 1
    %v256 = vadd.f32 %v254, %v255
    %v257 = vsel %vm179, %v174, 0.0
    %v258 = vrot.slane %v257, 4
    %v259 = vadd.f32 %v257, %v258
    %v260 = vrot.slane %v259, 2
    %v261 = vadd.f32 %v259, %v260
    %v262 = vrot.slane %v261, 1
    %v263 = vadd.f32 %v261, %v262
    %v264 = vsel %vm179, %v175, 0.0
    %v265 = vrot.slane %v264, 4
    %v266 = vadd.f32 %v264, %v265
    %v267 = vrot.slane %v266, 2
    %v268 = vadd.f32 %v266, %v267
    %v269 = vrot.slane %v268, 1
    %v270 = vadd.f32 %v268, %v269
    %v271 = vsel %vm179, %v176, 0.0
    %v272 = vrot.slane %v271, 4
    %v273 = vadd.f32 %v271, %v272
    %v274 = vrot.slane %v273, 2
    %v275 = vadd.f32 %v273, %v274
    %v276 = vrot.slane %v275, 1
    %v277 = vadd.f32 %v275, %v276
    %v278 = vsel %vm179, %v177, 0.0
    %v279 = vrot.slane %v278, 4
    %v280 = vadd.f32 %v278, %v279
    %v281 = vrot.slane %v280, 2
    %v282 = vadd.f32 %v280, %v281
    %v283 = vrot.slane %v282, 1
    %v284 = vadd.f32 %v282, %v283
    %v285 = vsel %vm179, %v178, 0.0
    %v286 = vrot.slane %v285, 4
    %v287 = vadd.f32 %v285, %v286
    %v288 = vrot.slane %v287, 2
    %v289 = vadd.f32 %v287, %v288
    %v290 = vrot.slane %v289, 1
    %v291 = vadd.f32 %v289, %v290
    %v292 = vld [vmem:[%s2] sm:$0xff]
    %v293 = vld [vmem:[%s2 + $0x8] sm:$0xff]
    %295 = vset.pattern.permute.xlu0 0
    %296 = vperm.xlu0 %295, %v292
    %v297 = vpop.permute.xlu0 %296
    %299 = vset.pattern.permute.xlu0 0
    %300 = vperm.xlu0 %299, %v293
    %v301 = vpop.permute.xlu0 %300
    %v302 = vrot.slane %v297, 1
    %v303 = vrot.slane %v297, 2
    %v304 = vrot.slane %v297, 3
    %v305 = vrot.slane %v297, 4
    %v306 = vrot.slane %v297, 5
    %v307 = vrot.slane %v297, 6
    %v308 = vrot.slane %v297, 7
    %v309 = vrot.slane %v301, 1
    %v310 = vrot.slane %v301, 2
    %v311 = vrot.slane %v301, 3
    %v312 = vrot.slane %v301, 4
    %v313 = vrot.slane %v301, 5
    %v314 = vrot.slane %v301, 6
    %v315 = vrot.slane %v301, 7
    %v332 = vmul.f32 %v186, %v297
    %v333 = vmul.f32 %v193, %v302
    %v334 = vmul.f32 %v200, %v303
    %v335 = vmul.f32 %v207, %v304
    %v336 = vmul.f32 %v214, %v305
    %v337 = vmul.f32 %v221, %v306
    %v338 = vmul.f32 %v228, %v307
    %v339 = vmul.f32 %v235, %v308
    %v340 = vmul.f32 %v242, %v301
    %v341 = vmul.f32 %v249, %v309
    %v342 = vmul.f32 %v256, %v310
    %v343 = vmul.f32 %v263, %v311
    %v344 = vmul.f32 %v270, %v312
    %v345 = vmul.f32 %v277, %v313
    %v346 = vmul.f32 %v284, %v314
    %v347 = vmul.f32 %v291, %v315
    %v348 = vld [vmem:[#allocation2 + $0x6] sm:$0x3f]
    %v349 = vld [vmem:[#allocation2 + $0x16] sm:$0x3f]
    %v350 = vld [vmem:[#allocation2 + $0x26] sm:$0x3f]
    %v351 = vld [vmem:[#allocation2 + $0x36] sm:$0x3f]
    %v352 = vld [vmem:[#allocation2 + $0x46] sm:$0x3f]
    %v353 = vld [vmem:[#allocation2 + $0x56] sm:$0x3f]
    %v354 = vld [vmem:[#allocation2 + $0x66] sm:$0x3f]
    %v355 = vld [vmem:[#allocation2 + $0x76] sm:$0x3f]
    %v356 = vld [vmem:[#allocation2 + $0x86] sm:$0x3f]
    %v357 = vld [vmem:[#allocation2 + $0x96] sm:$0x3f]
    %v358 = vld [vmem:[#allocation2 + $0xa6] sm:$0x3f]
    %v359 = vld [vmem:[#allocation2 + $0xb6] sm:$0x3f]
    %v360 = vld [vmem:[#allocation2 + $0xc6] sm:$0x3f]
    %v361 = vld [vmem:[#allocation2 + $0xd6] sm:$0x3f]
    %v362 = vld [vmem:[#allocation2 + $0xe6] sm:$0x3f]
    %v363 = vld [vmem:[#allocation2 + $0xf6] sm:$0x3f]
    %v364 = vlaneseq
    %v365 = vshrl.u32 %v364, 7
    %v366 = vsub.s32 0, %v365
    %v367 = vrot.slane %v332, %v366
    %v368 = vlaneseq
    %v369 = vshrl.u32 %v368, 7
    %v370 = vsub.s32 0, %v369
    %v371 = vrot.slane %v333, %v370
    %v372 = vlaneseq
    %v373 = vshrl.u32 %v372, 7
    %v374 = vsub.s32 0, %v373
    %v375 = vrot.slane %v334, %v374
    %v376 = vlaneseq
    %v377 = vshrl.u32 %v376, 7
    %v378 = vsub.s32 0, %v377
    %v379 = vrot.slane %v335, %v378
    %v380 = vlaneseq
    %v381 = vshrl.u32 %v380, 7
    %v382 = vsub.s32 0, %v381
    %v383 = vrot.slane %v336, %v382
    %v384 = vlaneseq
    %v385 = vshrl.u32 %v384, 7
    %v386 = vsub.s32 0, %v385
    %v387 = vrot.slane %v337, %v386
    %v388 = vlaneseq
    %v389 = vshrl.u32 %v388, 7
    %v390 = vsub.s32 0, %v389
    %v391 = vrot.slane %v338, %v390
    %v392 = vlaneseq
    %v393 = vshrl.u32 %v392, 7
    %v394 = vsub.s32 0, %v393
    %v395 = vrot.slane %v339, %v394
    %v396 = vlaneseq
    %v397 = vshrl.u32 %v396, 7
    %v398 = vsub.s32 0, %v397
    %v399 = vrot.slane %v340, %v398
    %v400 = vlaneseq
    %v401 = vshrl.u32 %v400, 7
    %v402 = vsub.s32 0, %v401
    %v403 = vrot.slane %v341, %v402
    %v404 = vlaneseq
    %v405 = vshrl.u32 %v404, 7
    %v406 = vsub.s32 0, %v405
    %v407 = vrot.slane %v342, %v406
    %v408 = vlaneseq
    %v409 = vshrl.u32 %v408, 7
    %v410 = vsub.s32 0, %v409
    %v411 = vrot.slane %v343, %v410
    %v412 = vlaneseq
    %v413 = vshrl.u32 %v412, 7
    %v414 = vsub.s32 0, %v413
    %v415 = vrot.slane %v344, %v414
    %v416 = vlaneseq
    %v417 = vshrl.u32 %v416, 7
    %v418 = vsub.s32 0, %v417
    %v419 = vrot.slane %v345, %v418
    %v420 = vlaneseq
    %v421 = vshrl.u32 %v420, 7
    %v422 = vsub.s32 0, %v421
    %v423 = vrot.slane %v346, %v422
    %v424 = vlaneseq
    %v425 = vshrl.u32 %v424, 7
    %v426 = vsub.s32 0, %v425
    %v427 = vrot.slane %v347, %v426
    %v428 = vmul.f32 %v348, %v367
    %v429 = vmul.f32 %v349, %v371
    %v430 = vmul.f32 %v350, %v375
    %v431 = vmul.f32 %v351, %v379
    %v432 = vmul.f32 %v352, %v383
    %v433 = vmul.f32 %v353, %v387
    %v434 = vmul.f32 %v354, %v391
    %v435 = vmul.f32 %v355, %v395
    %v436 = vmul.f32 %v356, %v399
    %v437 = vmul.f32 %v357, %v403
    %v438 = vmul.f32 %v358, %v407
    %v439 = vmul.f32 %v359, %v411
    %v440 = vmul.f32 %v360, %v415
    %v441 = vmul.f32 %v361, %v419
    %v442 = vmul.f32 %v362, %v423
    %v443 = vmul.f32 %v363, %v427
    %v444 = vsel %vm179, %v428, 0.0
    %445 = vadd.xlane.f32.xlu0 %v444
    %v446 = vpop.xlane.xlu0 %445
    %v447 = vsel %vm179, %v429, 0.0
    %448 = vadd.xlane.f32.xlu0 %v447
    %v449 = vpop.xlane.xlu0 %448
    %v450 = vsel %vm179, %v430, 0.0
    %451 = vadd.xlane.f32.xlu0 %v450
    %v452 = vpop.xlane.xlu0 %451
    %v453 = vsel %vm179, %v431, 0.0
    %454 = vadd.xlane.f32.xlu0 %v453
    %v455 = vpop.xlane.xlu0 %454
    %v456 = vsel %vm179, %v432, 0.0
    %457 = vadd.xlane.f32.xlu0 %v456
    %v458 = vpop.xlane.xlu0 %457
    %v459 = vsel %vm179, %v433, 0.0
    %460 = vadd.xlane.f32.xlu0 %v459
    %v461 = vpop.xlane.xlu0 %460
    %v462 = vsel %vm179, %v434, 0.0
    %463 = vadd.xlane.f32.xlu0 %v462
    %v464 = vpop.xlane.xlu0 %463
    %v465 = vsel %vm179, %v435, 0.0
    %466 = vadd.xlane.f32.xlu0 %v465
    %v467 = vpop.xlane.xlu0 %466
    %v468 = vsel %vm179, %v436, 0.0
    %469 = vadd.xlane.f32.xlu0 %v468
    %v470 = vpop.xlane.xlu0 %469
    %v471 = vsel %vm179, %v437, 0.0
    %472 = vadd.xlane.f32.xlu0 %v471
    %v473 = vpop.xlane.xlu0 %472
    %v474 = vsel %vm179, %v438, 0.0
    %475 = vadd.xlane.f32.xlu0 %v474
    %v476 = vpop.xlane.xlu0 %475
    %v477 = vsel %vm179, %v439, 0.0
    %478 = vadd.xlane.f32.xlu0 %v477
    %v479 = vpop.xlane.xlu0 %478
    %v480 = vsel %vm179, %v440, 0.0
    %481 = vadd.xlane.f32.xlu0 %v480
    %v482 = vpop.xlane.xlu0 %481
    %v483 = vsel %vm179, %v441, 0.0
    %484 = vadd.xlane.f32.xlu0 %v483
    %v485 = vpop.xlane.xlu0 %484
    %v486 = vsel %vm179, %v442, 0.0
    %487 = vadd.xlane.f32.xlu0 %v486
    %v488 = vpop.xlane.xlu0 %487
    %v489 = vsel %vm179, %v443, 0.0
    %490 = vadd.xlane.f32.xlu0 %v489
    %v491 = vpop.xlane.xlu0 %490
    %v492 = vlaneseq
    %v493 = vand.u32 %v492, 127
    %vm494 = vcmp.eq.s32.totalorder %v493, 0
    %v495 = vsub.f32 0.0, %v446
    %v496 = vsub.f32 0.0, %v449
    %v497 = vsub.f32 0.0, %v452
    %v498 = vsub.f32 0.0, %v455
    %v499 = vsub.f32 0.0, %v458
    %v500 = vsub.f32 0.0, %v461
    %v501 = vsub.f32 0.0, %v464
    %v502 = vsub.f32 0.0, %v467
    %v503 = vsub.f32 0.0, %v470
    %v504 = vsub.f32 0.0, %v473
    %v505 = vsub.f32 0.0, %v476
    %v506 = vsub.f32 0.0, %v479
    %v507 = vsub.f32 0.0, %v482
    %v508 = vsub.f32 0.0, %v485
    %v509 = vsub.f32 0.0, %v488
    %v510 = vsub.f32 0.0, %v491
    %v527 = vlaneseq
    %v528 = vshrl.u32 %v527, 7
    %v529 = vsub.s32 %v493, %v528
    %v530 = vrot.slane %v446, %v529
    %v531 = vlaneseq
    %v532 = vshrl.u32 %v531, 7
    %v533 = vsub.s32 %v493, %v532
    %v534 = vrot.slane %v449, %v533
    %v535 = vlaneseq
    %v536 = vshrl.u32 %v535, 7
    %v537 = vsub.s32 %v493, %v536
    %v538 = vrot.slane %v452, %v537
    %v539 = vlaneseq
    %v540 = vshrl.u32 %v539, 7
    %v541 = vsub.s32 %v493, %v540
    %v542 = vrot.slane %v455, %v541
    %v543 = vlaneseq
    %v544 = vshrl.u32 %v543, 7
    %v545 = vsub.s32 %v493, %v544
    %v546 = vrot.slane %v458, %v545
    %v547 = vlaneseq
    %v548 = vshrl.u32 %v547, 7
    %v549 = vsub.s32 %v493, %v548
    %v550 = vrot.slane %v461, %v549
    %v551 = vlaneseq
    %v552 = vshrl.u32 %v551, 7
    %v553 = vsub.s32 %v493, %v552
    %v554 = vrot.slane %v464, %v553
    %v555 = vlaneseq
    %v556 = vshrl.u32 %v555, 7
    %v557 = vsub.s32 %v493, %v556
    %v558 = vrot.slane %v467, %v557
    %v559 = vlaneseq
    %v560 = vshrl.u32 %v559, 7
    %v561 = vsub.s32 %v493, %v560
    %v562 = vrot.slane %v470, %v561
    %v563 = vlaneseq
    %v564 = vshrl.u32 %v563, 7
    %v565 = vsub.s32 %v493, %v564
    %v566 = vrot.slane %v473, %v565
    %v567 = vlaneseq
    %v568 = vshrl.u32 %v567, 7
    %v569 = vsub.s32 %v493, %v568
    %v570 = vrot.slane %v476, %v569
    %v571 = vlaneseq
    %v572 = vshrl.u32 %v571, 7
    %v573 = vsub.s32 %v493, %v572
    %v574 = vrot.slane %v479, %v573
    %v575 = vlaneseq
    %v576 = vshrl.u32 %v575, 7
    %v577 = vsub.s32 %v493, %v576
    %v578 = vrot.slane %v482, %v577
    %v579 = vlaneseq
    %v580 = vshrl.u32 %v579, 7
    %v581 = vsub.s32 %v493, %v580
    %v582 = vrot.slane %v485, %v581
    %v583 = vlaneseq
    %v584 = vshrl.u32 %v583, 7
    %v585 = vsub.s32 %v493, %v584
    %v586 = vrot.slane %v488, %v585
    %v587 = vlaneseq
    %v588 = vshrl.u32 %v587, 7
    %v589 = vsub.s32 %v493, %v588
    %v590 = vrot.slane %v491, %v589
    %vm591 = vcmask 1041409
    %v592 = vsel %vm591, %v534, %v530
    %vm593 = vcmask 1042434
    %v594 = vsel %vm593, %v538, %v592
    %vm595 = vcmask 1043459
    %v596 = vsel %vm595, %v542, %v594
    %vm597 = vcmask 1044484
    %v598 = vsel %vm597, %v546, %v596
    %vm599 = vcmask 1045509
    %v600 = vsel %vm599, %v550, %v598
    %vm601 = vcmask 1046534
    %v602 = vsel %vm601, %v554, %v600
    %vm603 = vcmask 1047559
    %v604 = vsel %vm603, %v558, %v602
    %v605 = vsel %vm591, %v566, %v562
    %v606 = vsel %vm593, %v570, %v605
    %v607 = vsel %vm595, %v574, %v606
    %v608 = vsel %vm597, %v578, %v607
    %v609 = vsel %vm599, %v582, %v608
    %v610 = vsel %vm601, %v586, %v609
    %v611 = vsel %vm603, %v590, %v610
    %v630 = vlaneseq
    %v631 = vshrl.u32 %v630, 7
    %v632 = vsub.s32 %v493, %v631
    %v633 = vrot.slane %v495, %v632
    %v634 = vlaneseq
    %v635 = vshrl.u32 %v634, 7
    %v636 = vsub.s32 %v493, %v635
    %v637 = vrot.slane %v496, %v636
    %v638 = vlaneseq
    %v639 = vshrl.u32 %v638, 7
    %v640 = vsub.s32 %v493, %v639
    %v641 = vrot.slane %v497, %v640
    %v642 = vlaneseq
    %v643 = vshrl.u32 %v642, 7
    %v644 = vsub.s32 %v493, %v643
    %v645 = vrot.slane %v498, %v644
    %v646 = vlaneseq
    %v647 = vshrl.u32 %v646, 7
    %v648 = vsub.s32 %v493, %v647
    %v649 = vrot.slane %v499, %v648
    %v650 = vlaneseq
    %v651 = vshrl.u32 %v650, 7
    %v652 = vsub.s32 %v493, %v651
    %v653 = vrot.slane %v500, %v652
    %v654 = vlaneseq
    %v655 = vshrl.u32 %v654, 7
    %v656 = vsub.s32 %v493, %v655
    %v657 = vrot.slane %v501, %v656
    %v658 = vlaneseq
    %v659 = vshrl.u32 %v658, 7
    %v660 = vsub.s32 %v493, %v659
    %v661 = vrot.slane %v502, %v660
    %v662 = vlaneseq
    %v663 = vshrl.u32 %v662, 7
    %v664 = vsub.s32 %v493, %v663
    %v665 = vrot.slane %v503, %v664
    %v666 = vlaneseq
    %v667 = vshrl.u32 %v666, 7
    %v668 = vsub.s32 %v493, %v667
    %v669 = vrot.slane %v504, %v668
    %v670 = vlaneseq
    %v671 = vshrl.u32 %v670, 7
    %v672 = vsub.s32 %v493, %v671
    %v673 = vrot.slane %v505, %v672
    %v674 = vlaneseq
    %v675 = vshrl.u32 %v674, 7
    %v676 = vsub.s32 %v493, %v675
    %v677 = vrot.slane %v506, %v676
    %v678 = vlaneseq
    %v679 = vshrl.u32 %v678, 7
    %v680 = vsub.s32 %v493, %v679
    %v681 = vrot.slane %v507, %v680
    %v682 = vlaneseq
    %v683 = vshrl.u32 %v682, 7
    %v684 = vsub.s32 %v493, %v683
    %v685 = vrot.slane %v508, %v684
    %v686 = vlaneseq
    %v687 = vshrl.u32 %v686, 7
    %v688 = vsub.s32 %v493, %v687
    %v689 = vrot.slane %v509, %v688
    %v690 = vlaneseq
    %v691 = vshrl.u32 %v690, 7
    %v692 = vsub.s32 %v493, %v691
    %v693 = vrot.slane %v510, %v692
    %v694 = vsel %vm591, %v637, %v633
    %v695 = vsel %vm593, %v641, %v694
    %v696 = vsel %vm595, %v645, %v695
    %v697 = vsel %vm597, %v649, %v696
    %v698 = vsel %vm599, %v653, %v697
    %v699 = vsel %vm601, %v657, %v698
    %v700 = vsel %vm603, %v661, %v699
    %v701 = vsel %vm591, %v669, %v665
    %v702 = vsel %vm593, %v673, %v701
    %v703 = vsel %vm595, %v677, %v702
    %v704 = vsel %vm597, %v681, %v703
    %v705 = vsel %vm599, %v685, %v704
    %v706 = vsel %vm601, %v689, %v705
    %v707 = vsel %vm603, %v693, %v706
    %v710 = vsel %vm494, %v604, %v700
    %v711 = vsel %vm494, %v611, %v707
    %v712 = vmax.f32 %v710, -10.0
    %v713 = vmax.f32 %v711, -10.0
    %v714 = vmin.f32 %v712, 10.0
    %v715 = vmin.f32 %v713, 10.0
    %v716 = vsub.f32 0.0, %v714
    %v717 = vsub.f32 0.0, %v715
    %v718 = vmul.f32 %v716, 1.442695
    %v719 = vpow.pop %v718
    %v720 = vmul.f32 %v717, 1.442695
    %v721 = vpow.pop %v720
    %v722 = vadd.f32 %v719, 1.0
    %v723 = vlog2.pop %v722
    %v724 = vmul.f32 %v723, 0.6931472
    %v725 = vmul.f32 -0.5, %v719
    %v726 = vadd.f32 %v725, 1.0
    %v727 = vmul.f32 %v726, %v719
    %v728 = vand.u32 2147483647, %v719
    %vm729 = vcmp.lt.f32.partialorder %v728, 0.0004427343
    %v730 = vsel %vm729, %v727, %v724
    %v731 = vadd.f32 %v721, 1.0
    %v732 = vlog2.pop %v731
    %v733 = vmul.f32 %v732, 0.6931472
    %v734 = vmul.f32 -0.5, %v721
    %v735 = vadd.f32 %v734, 1.0
    %v736 = vmul.f32 %v735, %v721
    %v737 = vand.u32 2147483647, %v721
    %vm738 = vcmp.lt.f32.partialorder %v737, 0.0004427343
    %v739 = vsel %vm738, %v736, %v733
    %v740 = vld [vmem:[%s3] sm:$0xff]
    %v741 = vld [vmem:[%s3 + $0x8] sm:$0xff]
    %v742 = vmul.f32 %v730, %v740
    %v743 = vmul.f32 %v739, %v741
    %vm744 = vcmask 48128
    %v745 = vsel %vm744, %v742, 0.0
    %v746 = vsel %vm744, %v743, 0.0
    %v747 = vadd.f32 %v745, %v746
    %748 = vadd.xlane.f32.xlu0 %v747
    %v749 = vpop.xlane.xlu0 %748
    %v750 = vrot.slane %v749, 4
    %v751 = vadd.f32 %v749, %v750
    %v752 = vrot.slane %v751, 2
    %v753 = vadd.f32 %v751, %v752
    %v754 = vrot.slane %v753, 1
    %v755 = vadd.f32 %v753, %v754
    %s756 = vtos %v755
    %v757 = vstv %s756
    %v758 = vsel %vm494, %v757, 0.0
    %759 = vst [vmem:[#allocation9] sm:$0x1] %v758
    // Predicated region
    $region29: #{tpu_custom_call.1} parent=1 // pred_check
      _
    $region30: #{tpu_custom_call.1} parent=1 // pred_check_branch
      %761 = sbr.rel (0) target = $region32
    $region31: #{tpu_custom_call.1} parent=1 // pred_region
      %s763 = ssub.s32 16, 16
      %764 = vsyncadd [#allocation8], %s763
      %s766 = sshll.u32 [#allocation9], 4
      %s767 = int_to_ptr.vmem [resolvable:$true] %s766
      %769 = dma.vmem_to_hbm [thread:$0]  %s767, 16, %s6, [#allocation8]
    $region32: #{tpu_custom_call.1} parent=1 // pred_fallthru
      _
    // Predicated region
    $region33: #{tpu_custom_call.1} parent=1 // pred_check
      _
    $region34: #{tpu_custom_call.1} parent=1 // pred_check_branch
      %771 = sbr.rel (0) target = $region36
    $region35: #{tpu_custom_call.1} parent=1 // pred_region
      %772 = dma.done [#allocation8], 16
    $region36: #{tpu_custom_call.1} parent=1 // pred_fallthru
      _
    %773 = vsyncpa [#allocation7], 1
    %774 = vsyncpa [#allocation8], 1

</llo_original>
